<compile_context>
chip_gen: v7x
topology: tpu7x:2x2x1
jax: 0.10.0
libtpu: 0.0.40
codegen_flags: <defaults>
</compile_context>

<pallas_src>
import functools
import math

import numpy as np
import jax
import jax.numpy as jnp
from jax.experimental import pallas as pl
from jax.experimental.pallas import tpu as pltpu


def _ps_kernel(x_ref, o_ref, wt_ref, *, r):
    """Pixel-shuffle one (channel-block, row-block) of the input.

    x_ref : (1, hb, r, r, hB, W)   input block (channel dim pre-split to (hb, r, r))
    o_ref : (g, ocb, hB, r*W*r)    output block, g*ocb == hb.  Lane range
                                   [i*Wr, (i+1)*Wr) of the last axis holds output
                                   row h*r+i (wrapper reshape turns it into (Hr, Wr)).
    wt_ref: (hb, W*r, hB)          VMEM scratch: width-interleaved, transposed planes.
    """
    hb = x_ref.shape[1]
    hB = x_ref.shape[4]
    W = x_ref.shape[5]
    Wr = W * r
    g, ocb = o_ref.shape[0], o_ref.shape[1]

    for i in range(r):
        # ---- width interleave (over j), on transposed planes ----------------
        # wt[c, w*r + j, h] = x[c, i, j, h, w]  -> sublane-strided store, lane
        # dim of the scratch stays contiguous.
        for j in range(r):
            xt = jnp.transpose(x_ref[0, :, i, j], (0, 2, 1))       # (hb, W, hB)
            wt_ref[:, pl.ds(j, W, stride=r), :] = xt               # rows j, j+r, ...
        # Back to row-major orientation: y[c, h, w*r + j] = x[c, i, j, h, w]
        y = jnp.transpose(wt_ref[...], (0, 2, 1))                  # (hb, hB, Wr)
        # ---- height interleave (over i) --------------------------------------
        # In the (H, r*Wr) output view, output row h*r+i lives at lane offset
        # i*Wr of input row h -> static, contiguous slice store (no stride).
        o_ref[:, :, :, i * Wr:(i + 1) * Wr] = y.reshape(g, ocb, hB, Wr)


# ----------------------------------------------------------------------------
# Block-size / VMEM-budget selection (padding- and generation-aware)
# ----------------------------------------------------------------------------
def _ceil_to(x, m):
    return -(-x // m) * m


def _padded_vmem_bytes(shape, dtype):
    """VMEM footprint of a buffer including (sublane,128) tile padding and
    sub-32-bit sublane packing."""
    itemsize = np.dtype(dtype).itemsize
    sub = 8 * max(1, 4 // itemsize)            # 8 (32-bit), 16 (bf16), 32 (int8)
    if len(shape) < 2:
        return _ceil_to(int(np.prod(shape)) * itemsize, 512)
    lead = 1
    for d in shape[:-2]:
        lead *= d
    return lead * _ceil_to(shape[-2], sub) * _ceil_to(shape[-1], 128) * itemsize


def _divisors_desc(n):
    return sorted((d for d in range(1, n + 1) if n % d == 0), reverse=True)


def _hb_candidates(hidden, out_channels):
    """Channel-block sizes (descending) that keep the .view regrouping a single
    contiguous output block: either g whole output rows, or a slice of one row."""
    cands = []
    if hidden % out_channels == 0:
        cands += [c for c in range(hidden, 0, -out_channels) if hidden % c == 0]
    g = math.gcd(hidden, out_channels)
    cands += [d for d in _divisors_desc(g) if d not in cands]
    return cands


def _step_footprint_bytes(hb, hB, r, W, dtype):
    """Padded per-grid-step VMEM footprint: double-buffered in/out blocks,
    the transposed scratch, and the main compiler temporaries."""
    Wr = W * r
    in_blk = _padded_vmem_bytes((hb * r * r, hB, W), dtype)
    out_blk = _padded_vmem_bytes((hb, hB, r * Wr), dtype)
    wt = _padded_vmem_bytes((hb, Wr, hB), dtype)
    tmp = _padded_vmem_bytes((hb, W, hB), dtype) + _padded_vmem_bytes((hb, hB, Wr), dtype)
    return 2 * in_blk + 2 * out_blk + wt + tmp


def _pick_blocks(N, hidden, out_channels, H, W, r, dtype):
    itemsize = np.dtype(dtype).itemsize
    sub = 8 * max(1, 4 // itemsize)

    try:
        vmem_cap = int(pltpu.get_tpu_info().vmem_capacity_bytes)
    except Exception:
        vmem_cap = 64 * 1024 * 1024            # conservative (v7x-sized) fallback
    vmem_limit = min(int(vmem_cap * 0.75), vmem_cap - (4 << 20))
    budget = vmem_limit // 2                   # headroom for pipeline/compiler temps

    # Legal H-blocks: divisible by the (packed) sublane tile, or the full extent.
    h_cands = [d for d in _divisors_desc(H) if d == H or d % sub == 0]
    hb_cands = _hb_candidates(hidden, out_channels)

    hb, hB = hb_cands[-1], h_cands[-1]
    chosen = False
    for c in hb_cands:                         # biggest channel block that fits
        if _step_footprint_bytes(c, H, r, W, dtype) <= budget:
            hb, hB, chosen = c, H, True
            break
    if not chosen:                             # plane too big: split rows instead
        hb = hb_cands[-1]
        for d in h_cands:
            if _step_footprint_bytes(hb, d, r, W, dtype) <= budget:
                hB = d
                break

    # Give the grid enough steps to feed both TensorCores / the DMA pipeline.
    def n_steps(hB_):
        return N * (hidden // hb) * (H // hB_)

    idx = h_cands.index(hB)
    while n_steps(hB) < 4 and idx + 1 < len(h_cands):
        idx += 1
        hB = h_cands[idx]

    return hb, hB, vmem_limit


# ----------------------------------------------------------------------------
# Wrapper
# ----------------------------------------------------------------------------
def ps_forward(x, out_channels, scale):
    """Pallas implementation of PS(in_channels, out_channels, scale).forward."""
    N, C_in, H, W = x.shape
    r = scale
    assert C_in % (r * r) == 0
    hidden = C_in // (r * r)
    Hr, Wr = H * r, W * r
    assert (N * hidden) % out_channels == 0
    n_out = (N * hidden) // out_channels

    hb, hB, vmem_limit = _pick_blocks(N, hidden, out_channels, H, W, r, x.dtype)
    grid_c = hidden // hb
    grid_h = H // hB

    if hb % out_channels == 0:
        # Block covers g = hb // out_channels full output "rows".
        g, ocb = hb // out_channels, out_channels

        def o_map(n, cb, hblk):
            return (n * grid_c + cb, 0, hblk, 0)
    else:
        # out_channels % hb == 0: block is a contiguous slice of one output row.
        g, ocb = 1, hb

        def o_map(n, cb, hblk):
            p0 = n * hidden + cb * hb          # flat plane index of block start
            return (p0 // out_channels, (p0 % out_channels) // hb, hblk, 0)

    # Free, layout-preserving dim split (no data movement): C_in -> (hidden, r, r)
    xr = x.reshape(N, hidden, r, r, H, W)

    kernel = functools.partial(_ps_kernel, r=r)
    out = pl.pallas_call(
        kernel,
        # Lane-dense output layout (planes, out_ch, H, r*Wr); reshaped for free below.
        out_shape=jax.ShapeDtypeStruct((n_out, out_channels, H, r * Wr), x.dtype),
        grid=(N, grid_c, grid_h),
        in_specs=[
            pl.BlockSpec((1, hb, r, r, hB, W),
                         lambda n, cb, hblk: (n, cb, 0, 0, hblk, 0)),
        ],
        out_specs=pl.BlockSpec((g, ocb, hB, r * Wr), o_map),
        scratch_shapes=[pltpu.VMEM((hb, Wr, hB), x.dtype)],
        compiler_params=pltpu.CompilerParams(
            # Every grid step writes a distinct output block -> fully parallel.
            dimension_semantics=("parallel", "parallel", "parallel"),
            vmem_limit_bytes=vmem_limit,
        ),
        cost_estimate=pl.CostEstimate(
            flops=0, transcendentals=0,
            bytes_accessed=2 * x.size * x.dtype.itemsize),
    )(xr)

    # Free row-major reshape: (H, r*Wr) -> (H*r, Wr) is exactly the shuffled layout.
    return out.reshape(n_out, out_channels, Hr, Wr)


def _ps_reference(x, out_channels, scale):
    """Plain-JAX reference matching torch.nn.PixelShuffle + view."""
    N, C_in, H, W = x.shape
    hidden = C_in // (scale * scale)
    y = x.reshape(N, hidden, scale, scale, H, W)
    y = jnp.transpose(y, (0, 1, 4, 2, 5, 3))
    y = y.reshape(N, hidden, H * scale, W * scale)
    return y.reshape(-1, out_channels, H * scale, W * scale)


if __name__ == "__main__":
    # in_channels=16, scale=2 -> hidden=4; out_channels=2
    # input (2, 16, 16, 16) -> output (4, 2, 32, 32)
    N, C_in, H, W = 2, 16, 16, 16
    scale = 2
    out_channels = 2

    key = jax.random.PRNGKey(0)
    x = jax.random.normal(key, (N, C_in, H, W), dtype=jnp.float32)

    out = jax.block_until_ready(ps_forward(x, out_channels, scale))

    ref = _ps_reference(x, out_channels, scale)
    assert out.shape == ref.shape, (out.shape, ref.shape)
    # Pure data movement -> must be bit-exact.
    assert bool(jnp.array_equal(out, ref)), "mismatch vs reference pixel shuffle"

    print("KERNEL_OK")
</pallas_src>

<mosaic_0001>
module attributes {stable_mosaic.version = 11 : i64} {
  func.func @_ps_kernel(%arg0: i32, %arg1: i32, %arg2: i32, %arg3: memref<1x4x2x2x8x16xf32, #tpu.memory_space<vmem>>, %arg4: memref<2x2x8x64xf32, #tpu.memory_space<vmem>>, %arg5: memref<4x32x8xf32, #tpu.memory_space<vmem>>) attributes {dimension_semantics = [#tpu.dimension_semantics<parallel>, #tpu.dimension_semantics<parallel>, #tpu.dimension_semantics<parallel>], iteration_bounds = array<i64: 2, 1, 2>, scalar_prefetch = 0 : i64, scratch_operands = 1 : i64, tpu.core_type = #tpu.core_type<tc>, window_params = [{transform_indices = @transform_0, window_bounds = array<i64: 1, 4, 2, 2, 8, 16>}, {transform_indices = @transform_1, window_bounds = array<i64: 2, 2, 8, 64>}]} {
    %c0 = arith.constant 0 : index
    %c0_0 = arith.constant 0 : index
    %c0_1 = arith.constant 0 : index
    %c0_2 = arith.constant 0 : index
    %c0_3 = arith.constant 0 : index
    %c0_4 = arith.constant 0 : index
    %0 = vector.load %arg3[%c0, %c0_0, %c0_1, %c0_2, %c0_3, %c0_4] : memref<1x4x2x2x8x16xf32, #tpu.memory_space<vmem>>, vector<1x4x1x1x8x16xf32>
    %1 = vector.shape_cast %0 : vector<1x4x1x1x8x16xf32> to vector<4x8x16xf32>
    %2 = tpu.transpose %1, [0, 2, 1] : vector<4x8x16xf32> -> vector<4x16x8xf32>
    %c0_5 = arith.constant 0 : index
    %c0_6 = arith.constant 0 : index
    %c0_7 = arith.constant 0 : index
    %3 = tpu.strided_load %arg5[%c0_5, %c0_6, %c0_7] {strides = array<i32: 1, 2, 1>} : memref<4x32x8xf32, #tpu.memory_space<vmem>>, vector<4x16x8xf32>
    tpu.strided_store %arg5[%c0_5, %c0_6, %c0_7], %2 {strides = array<i32: 1, 2, 1>} : memref<4x32x8xf32, #tpu.memory_space<vmem>>, vector<4x16x8xf32>
    %c0_8 = arith.constant 0 : index
    %c0_9 = arith.constant 0 : index
    %c0_10 = arith.constant 0 : index
    %c1 = arith.constant 1 : index
    %c0_11 = arith.constant 0 : index
    %c0_12 = arith.constant 0 : index
    %4 = vector.load %arg3[%c0_8, %c0_9, %c0_10, %c1, %c0_11, %c0_12] : memref<1x4x2x2x8x16xf32, #tpu.memory_space<vmem>>, vector<1x4x1x1x8x16xf32>
    %5 = vector.shape_cast %4 : vector<1x4x1x1x8x16xf32> to vector<4x8x16xf32>
    %6 = tpu.transpose %5, [0, 2, 1] : vector<4x8x16xf32> -> vector<4x16x8xf32>
    %c0_13 = arith.constant 0 : index
    %c1_14 = arith.constant 1 : index
    %c0_15 = arith.constant 0 : index
    %7 = tpu.strided_load %arg5[%c0_13, %c1_14, %c0_15] {strides = array<i32: 1, 2, 1>} : memref<4x32x8xf32, #tpu.memory_space<vmem>>, vector<4x16x8xf32>
    tpu.strided_store %arg5[%c0_13, %c1_14, %c0_15], %6 {strides = array<i32: 1, 2, 1>} : memref<4x32x8xf32, #tpu.memory_space<vmem>>, vector<4x16x8xf32>
    %c0_16 = arith.constant 0 : index
    %c0_17 = arith.constant 0 : index
    %c0_18 = arith.constant 0 : index
    %8 = vector.load %arg5[%c0_16, %c0_17, %c0_18] : memref<4x32x8xf32, #tpu.memory_space<vmem>>, vector<4x32x8xf32>
    %9 = tpu.transpose %8, [0, 2, 1] : vector<4x32x8xf32> -> vector<4x8x32xf32>
    %10 = vector.shape_cast %9 : vector<4x8x32xf32> to vector<2x2x8x32xf32>
    %c0_19 = arith.constant 0 : index
    %c0_20 = arith.constant 0 : index
    %c0_21 = arith.constant 0 : index
    %c0_22 = arith.constant 0 : index
    %11 = vector.load %arg4[%c0_19, %c0_20, %c0_21, %c0_22] : memref<2x2x8x64xf32, #tpu.memory_space<vmem>>, vector<2x2x8x32xf32>
    tpu.vector_store %arg4[%c0_19, %c0_20, %c0_21, %c0_22], %10 {strides = array<i32>} : memref<2x2x8x64xf32, #tpu.memory_space<vmem>>, vector<2x2x8x32xf32>,
    %c0_23 = arith.constant 0 : index
    %c0_24 = arith.constant 0 : index
    %c1_25 = arith.constant 1 : index
    %c0_26 = arith.constant 0 : index
    %c0_27 = arith.constant 0 : index
    %c0_28 = arith.constant 0 : index
    %12 = vector.load %arg3[%c0_23, %c0_24, %c1_25, %c0_26, %c0_27, %c0_28] : memref<1x4x2x2x8x16xf32, #tpu.memory_space<vmem>>, vector<1x4x1x1x8x16xf32>
    %13 = vector.shape_cast %12 : vector<1x4x1x1x8x16xf32> to vector<4x8x16xf32>
    %14 = tpu.transpose %13, [0, 2, 1] : vector<4x8x16xf32> -> vector<4x16x8xf32>
    %c0_29 = arith.constant 0 : index
    %c0_30 = arith.constant 0 : index
    %c0_31 = arith.constant 0 : index
    %15 = tpu.strided_load %arg5[%c0_29, %c0_30, %c0_31] {strides = array<i32: 1, 2, 1>} : memref<4x32x8xf32, #tpu.memory_space<vmem>>, vector<4x16x8xf32>
    tpu.strided_store %arg5[%c0_29, %c0_30, %c0_31], %14 {strides = array<i32: 1, 2, 1>} : memref<4x32x8xf32, #tpu.memory_space<vmem>>, vector<4x16x8xf32>
    %c0_32 = arith.constant 0 : index
    %c0_33 = arith.constant 0 : index
    %c1_34 = arith.constant 1 : index
    %c1_35 = arith.constant 1 : index
    %c0_36 = arith.constant 0 : index
    %c0_37 = arith.constant 0 : index
    %16 = vector.load %arg3[%c0_32, %c0_33, %c1_34, %c1_35, %c0_36, %c0_37] : memref<1x4x2x2x8x16xf32, #tpu.memory_space<vmem>>, vector<1x4x1x1x8x16xf32>
    %17 = vector.shape_cast %16 : vector<1x4x1x1x8x16xf32> to vector<4x8x16xf32>
    %18 = tpu.transpose %17, [0, 2, 1] : vector<4x8x16xf32> -> vector<4x16x8xf32>
    %c0_38 = arith.constant 0 : index
    %c1_39 = arith.constant 1 : index
    %c0_40 = arith.constant 0 : index
    %19 = tpu.strided_load %arg5[%c0_38, %c1_39, %c0_40] {strides = array<i32: 1, 2, 1>} : memref<4x32x8xf32, #tpu.memory_space<vmem>>, vector<4x16x8xf32>
    tpu.strided_store %arg5[%c0_38, %c1_39, %c0_40], %18 {strides = array<i32: 1, 2, 1>} : memref<4x32x8xf32, #tpu.memory_space<vmem>>, vector<4x16x8xf32>
    %c0_41 = arith.constant 0 : index
    %c0_42 = arith.constant 0 : index
    %c0_43 = arith.constant 0 : index
    %20 = vector.load %arg5[%c0_41, %c0_42, %c0_43] : memref<4x32x8xf32, #tpu.memory_space<vmem>>, vector<4x32x8xf32>
    %21 = tpu.transpose %20, [0, 2, 1] : vector<4x32x8xf32> -> vector<4x8x32xf32>
    %22 = vector.shape_cast %21 : vector<4x8x32xf32> to vector<2x2x8x32xf32>
    %c0_44 = arith.constant 0 : index
    %c0_45 = arith.constant 0 : index
    %c0_46 = arith.constant 0 : index
    %c32 = arith.constant 32 : index
    %23 = vector.load %arg4[%c0_44, %c0_45, %c0_46, %c32] : memref<2x2x8x64xf32, #tpu.memory_space<vmem>>, vector<2x2x8x32xf32>
    tpu.vector_store %arg4[%c0_44, %c0_45, %c0_46, %c32], %22 {strides = array<i32>} : memref<2x2x8x64xf32, #tpu.memory_space<vmem>>, vector<2x2x8x32xf32>,
    return
  }
  func.func @transform_0(%arg0: i32, %arg1: i32, %arg2: i32) -> (i32, i32, i32, i32, i32, i32) {
    %c0_i32 = arith.constant 0 : i32
    %c0_i32_0 = arith.constant 0 : i32
    %c0_i32_1 = arith.constant 0 : i32
    %c0_i32_2 = arith.constant 0 : i32
    return %arg0, %arg1, %c0_i32, %c0_i32_0, %arg2, %c0_i32_1 : i32, i32, i32, i32, i32, i32
  }
  func.func @transform_1(%arg0: i32, %arg1: i32, %arg2: i32) -> (i32, i32, i32, i32) {
    %c1_i32 = arith.constant 1 : i32
    %0 = arith.muli %arg0, %c1_i32 : i32
    %1 = arith.addi %0, %arg1 : i32
    %c0_i32 = arith.constant 0 : i32
    %c0_i32_0 = arith.constant 0 : i32
    %c0_i32_1 = arith.constant 0 : i32
    return %1, %c0_i32, %arg2, %c0_i32_0 : i32, i32, i32, i32
  }
}

</mosaic_0001>

<llo_original>
// kernel: tpu_custom_call.1
$region0: #{tpu_custom_call.1}
  #allocation0 [shape = 'u32[]', space=smem, size = 0x4, offset = 0x4, fixed_abs, tag = 'smem constant byte address 0x4 - core index']
  #allocation1 [shape = 'u32[144,128]{1,0:T(1,128)}', space=vmem, size = 0x12000, scoped, tag = 'internal scratch']
  #allocation2 [shape = 'f32[4,32,8]{2,1,0:T(8,128)}', space=vmem, size = 0x10000, scoped, tag = 'scratch operand']
  %s0 = inlined_call_operand.hbm [shape: f32[2,4,2,2,16,16], index: 0, kind: input, shape index: {}]
  %s1 = inlined_call_operand.hbm [shape: f32[4,2,16,64], index: 1, kind: output, shape index: {}]
  %s2 = sld [smem:[#allocation0]]
  $region41: #{tpu_custom_call.1} parent=0
    _
  %s4 = ssub.s32 1, %s2
  %s5 = scalar_select 0, %s4, %s2
  $region1: #{tpu_custom_call.1} parent=0
    #allocation3 [shape = 'u8[131072]{0}', space=vmem, size = 0x20000, scoped, tag = 'input window, operand 0']
    #allocation4 [shape = 's32[2]{0}', space=sflag, size = 0x8, scoped, tag = 'scoped memory for tpu_custom_call.1']
    #allocation5 [shape = 's32[2]{0}', space=sflag, size = 0x8, scoped, tag = 'scoped memory for tpu_custom_call.1']
    #allocation6 [shape = 'u8[32768]{0}', space=vmem, size = 0x8000, scoped, tag = 'output window, operand 0']
    %6 = vsyncpa [#allocation4], 0
    %s7 = scalar_lea.sflag [#allocation4], 1
    %8 = vsyncpa %s7, 0
    %9 = vsyncpa [#allocation5], 0
    %s10 = scalar_lea.sflag [#allocation5], 1
    %11 = vsyncpa %s10, 0
    loop: start=0, step=1, limit=6
    $region2: #{tpu_custom_call.1} parent=1 // loop_pre_header
      _
    $region3: #{tpu_custom_call.1} parent=1 // loop_header
      %s13 = sphi 0, %s17
      %p14 = scmp.ge.s32.totalorder %s13, 6
      %s20 = sphi 0, %s39
      %s21 = sphi 0, %s35
      %s22 = sphi 0, %s31
      %s23 = sphi 0, %s20
      %s24 = sphi 0, %s21
      %s25 = sphi 0, %s22
      %s26 = sphi 0, %s23
      %s27 = sphi 0, %s24
      %s28 = sphi 0, %s25
      %s46 = sphi 0, %s48
      %s49 = sphi 0, %s46
      %s50 = sphi 0, %s49
      %s66 = sphi 0, %s50
      %s76 = sphi 0, %s78
      %s79 = sphi 0, %s76
      %s80 = sphi 0, %s79
      %s96 = sphi 0, %s80
    $region4: #{tpu_custom_call.1} parent=1 // loop_header_branch
      %16 = sbr.rel (%p14) target = $region8
    $region5: #{tpu_custom_call.1} parent=1 // loop_body
      %s18 = ssub.s32 %s13, 1
      %s19 = ssub.s32 %s13, 2
      %s29 = sadd.s32 1, %s22
      %p30 = scmp.ge.s32.totalorder %s29, 2
      %s31 = scalar_select %p30, 0, %s29
      %s32 = sadd.s32 1, %s21
      %s33 = scalar_select %p30, %s32, %s21
      %p34 = scmp.ge.s32.totalorder %s33, 1
      %s35 = scalar_select %p34, 0, %s33
      %s36 = sadd.s32 1, %s20
      %s37 = scalar_select %p34, %s36, %s20
      %p38 = scmp.ge.s32.totalorder %s37, 2
      %s39 = scalar_select %p38, 0, %s37
      %s40 = ssub.s32 %s20, %s39
      %s41 = ssub.s32 %s21, %s35
      %s42 = sor.u32 %s40, %s41
      %s43 = ssub.s32 %s22, %s31
      %s44 = sor.u32 %s42, %s43
      %p45 = scmp.eq.s32.totalorder %s44, 0
      %s47 = sadd.s32 %s46, 1
      %s48 = scalar_select %p45, %s46, %s47
      %p51 = pneg %p45
      %p52 = scmp.eq.s32.totalorder %s13, 3
      %p53 = por %p51, %p52
      %p54 = scmp.ne.s32.totalorder %s46, %s49
      %p55 = scmp.eq.s32.totalorder %s13, 0
      %p56 = por %p54, %p55
      %p57 = scmp.ne.s32.totalorder %s46, %s49
      %p58 = scmp.eq.s32.totalorder %s18, 3
      %p59 = por %p57, %p58
      %p60 = scmp.ne.s32.totalorder %s49, %s50
      %p61 = scmp.eq.s32.totalorder %s18, 0
      %p62 = por %p60, %p61
      %p63 = scmp.ne.s32.totalorder %s49, %s50
      %p64 = scmp.eq.s32.totalorder %s19, 3
      %p65 = por %p63, %p64
      %p67 = scmp.ne.s32.totalorder %s50, %s66
      %p68 = scmp.eq.s32.totalorder %s19, 0
      %p69 = por %p67, %p68
      %s70 = sadd.s32 %s20, %s21
      %s71 = sadd.s32 %s39, %s35
      %s72 = ssub.s32 %s70, %s71
      %s73 = ssub.s32 %s22, %s31
      %s74 = sor.u32 %s72, %s73
      %p75 = scmp.eq.s32.totalorder %s74, 0
      %s77 = sadd.s32 %s76, 1
      %s78 = scalar_select %p75, %s76, %s77
      %p81 = pneg %p75
      %p82 = scmp.eq.s32.totalorder %s13, 3
      %p83 = por %p81, %p82
      %p84 = scmp.ne.s32.totalorder %s76, %s79
      %p85 = scmp.eq.s32.totalorder %s13, 0
      %p86 = por %p84, %p85
      %p87 = scmp.ne.s32.totalorder %s76, %s79
      %p88 = scmp.eq.s32.totalorder %s18, 3
      %p89 = por %p87, %p88
      %p90 = scmp.ne.s32.totalorder %s79, %s80
      %p91 = scmp.eq.s32.totalorder %s18, 0
      %p92 = por %p90, %p91
      %p93 = scmp.ne.s32.totalorder %s79, %s80
      %p94 = scmp.eq.s32.totalorder %s19, 3
      %p95 = por %p93, %p94
      %p97 = scmp.ne.s32.totalorder %s80, %s96
      %p98 = scmp.eq.s32.totalorder %s19, 0
      %p99 = por %p97, %p98
      %p100 = scmp.le.s32.totalorder 1, %s13
      %p101 = scmp.lt.s32.totalorder %s13, 5
      %p102 = pnand %p100, %p101
      %p103 = pneg %p102
      // Predicated region
      $region9: #{tpu_custom_call.1} parent=5 // pred_check
        _
      $region10: #{tpu_custom_call.1} parent=5 // pred_check_branch
        %105 = sbr.rel (%p102) target = $region12
      $region11: #{tpu_custom_call.1} parent=5 // pred_region
        %s106 = ssub.s32 %s13, 1
      $region12: #{tpu_custom_call.1} parent=5 // pred_fallthru
        _
      %p107 = scmp.lt.s32.totalorder %s13, 4
      // Predicated region
      $region13: #{tpu_custom_call.1} parent=5 // pred_check
        %p108 = pneg %p107
      $region14: #{tpu_custom_call.1} parent=5 // pred_check_branch
        %110 = sbr.rel (%p108) target = $region16
      $region15: #{tpu_custom_call.1} parent=5 // pred_region
        // Predicated region
        $region17: #{tpu_custom_call.1} parent=15 // pred_check
          %p111 = pneg %p56
        $region18: #{tpu_custom_call.1} parent=15 // pred_check_branch
          %113 = sbr.rel (%p111) target = $region20
        $region19: #{tpu_custom_call.1} parent=15 // pred_region
          %s114 = sand.u32 %s46, 1
          %s115 = scalar_lea.sflag [#allocation4], %s114
          %s116 = sand.u32 %s46, 1
          %s117 = smul.addr %s116, 128
          %s118 = scalar_lea.vmem [#allocation3], %s117
          %s119 = smul.u32 4, %s21
          %s121 = ssub.s32 2048, 2048
          %122 = vsyncadd %s115, %s121
          %s123 = smul.addr %s119, 8
          %s124 = sadd.s32 %s22, %s123
          %s125 = smul.addr %s20, 32
          %s126 = sadd.s32 %s124, %s125
          %s127 = smul.addr %s126, 128
          %s128 = scalar_lea.hbm %s0, %s127
          %s129 = sshll.u32 %s118, 4
          %s130 = int_to_ptr.vmem [resolvable:$true] %s129
          %135 = dma.hbm_to_vmem [thread:$0]  %s128, 2048, %s130, %s115, 256, 128, 8
        $region20: #{tpu_custom_call.1} parent=15 // pred_fallthru
          _
      $region16: #{tpu_custom_call.1} parent=5 // pred_fallthru
        _
      %p136 = scmp.le.s32.totalorder 1, %s13
      %p137 = scmp.lt.s32.totalorder %s13, 5
      %p138 = pnand %p136, %p137
      %p139 = pneg %p138
      // Predicated region
      $region21: #{tpu_custom_call.1} parent=5 // pred_check
        _
      $region22: #{tpu_custom_call.1} parent=5 // pred_check_branch
        %141 = sbr.rel (%p138) target = $region24
      $region23: #{tpu_custom_call.1} parent=5 // pred_region
        %s142 = ssub.s32 %s13, 1
        %s143 = sand.u32 %s49, 1
        %s144 = scalar_lea.sflag [#allocation4], %s143
        %s145 = sand.u32 %s49, 1
        %s146 = smul.addr %s145, 128
        %s147 = scalar_lea.vmem [#allocation3], %s146
        // Predicated region
        $region25: #{tpu_custom_call.1} parent=23 // pred_check
          %p148 = pneg %p62
        $region26: #{tpu_custom_call.1} parent=23 // pred_check_branch
          %150 = sbr.rel (%p148) target = $region28
        $region27: #{tpu_custom_call.1} parent=23 // pred_region
          %151 = dma.done %s144, 2048
        $region28: #{tpu_custom_call.1} parent=23 // pred_fallthru
          _
        %s152 = sand.u32 %s49, 1
        %s153 = scalar_lea.sflag [#allocation4], %s152
        %s154 = sand.u32 %s49, 1
        %s155 = smul.addr %s154, 128
        %s156 = scalar_lea.vmem [#allocation3], %s155
        %p157 = pneg %p62
        %p158 = pneg %p59
        %p159 = pneg %p92
        %p160 = pneg %p89
        %s161 = sand.u32 %s79, 1
        %s162 = scalar_lea.sflag [#allocation5], %s161
        %s163 = sand.u32 %s79, 1
        %s164 = smul.addr %s163, 32
        %s165 = scalar_lea.vmem [#allocation6], %s164
        %s166 = smul.u32 4, %s24
        %s167 = sadd.s32 %s23, %s24
        %s168 = smul.u32 2, %s167
        %v169 = vld [vmem:[%s147] sm:$0xff]
        %v170 = vld [vmem:[%s147 + $0x20] sm:$0xff]
        %v171 = vld [vmem:[%s147 + $0x40] sm:$0xff]
        %v172 = vld [vmem:[%s147 + $0x60] sm:$0xff]
        %173 = vxpose.xlu0.b32.start [1/16] %v169, 128
        %174 = vxpose.xlu0.b32.cont [2/16] 0.0, 128
        %175 = vxpose.xlu0.b32.cont [3/16] 0.0, 128
        %176 = vxpose.xlu0.b32.cont [4/16] 0.0, 128
        %177 = vxpose.xlu0.b32.cont [5/16] 0.0, 128
        %178 = vxpose.xlu0.b32.cont [6/16] 0.0, 128
        %179 = vxpose.xlu0.b32.cont [7/16] 0.0, 128
        %180 = vxpose.xlu0.b32.cont [8/16] 0.0, 128
        %181 = vxpose.xlu0.b32.cont [9/16] 0.0, 128
        %182 = vxpose.xlu0.b32.cont [10/16] 0.0, 128
        %183 = vxpose.xlu0.b32.cont [11/16] 0.0, 128
        %184 = vxpose.xlu0.b32.cont [12/16] 0.0, 128
        %185 = vxpose.xlu0.b32.cont [13/16] 0.0, 128
        %186 = vxpose.xlu0.b32.cont [14/16] 0.0, 128
        %187 = vxpose.xlu0.b32.cont [15/16] 0.0, 128
        %188 = vxpose.xlu0.b32.end [16/16] 0.0, 128
        %v189 = vpop.trf.xlu0
        %v190 = vpop.trf.xlu0
        %v191 = vpop.trf.xlu0
        %v192 = vpop.trf.xlu0
        %v193 = vpop.trf.xlu0
        %v194 = vpop.trf.xlu0
        %v195 = vpop.trf.xlu0
        %v196 = vpop.trf.xlu0
        %v197 = vpop.trf.xlu0
        %v198 = vpop.trf.xlu0
        %v199 = vpop.trf.xlu0
        %v200 = vpop.trf.xlu0
        %v201 = vpop.trf.xlu0
        %v202 = vpop.trf.xlu0
        %v203 = vpop.trf.xlu0
        %v204 = vpop.trf.xlu0
        %205 = vxpose.xlu0.b32.start [1/16] %v170, 128
        %206 = vxpose.xlu0.b32.cont [2/16] 0.0, 128
        %207 = vxpose.xlu0.b32.cont [3/16] 0.0, 128
        %208 = vxpose.xlu0.b32.cont [4/16] 0.0, 128
        %209 = vxpose.xlu0.b32.cont [5/16] 0.0, 128
        %210 = vxpose.xlu0.b32.cont [6/16] 0.0, 128
        %211 = vxpose.xlu0.b32.cont [7/16] 0.0, 128
        %212 = vxpose.xlu0.b32.cont [8/16] 0.0, 128
        %213 = vxpose.xlu0.b32.cont [9/16] 0.0, 128
        %214 = vxpose.xlu0.b32.cont [10/16] 0.0, 128
        %215 = vxpose.xlu0.b32.cont [11/16] 0.0, 128
        %216 = vxpose.xlu0.b32.cont [12/16] 0.0, 128
        %217 = vxpose.xlu0.b32.cont [13/16] 0.0, 128
        %218 = vxpose.xlu0.b32.cont [14/16] 0.0, 128
        %219 = vxpose.xlu0.b32.cont [15/16] 0.0, 128
        %220 = vxpose.xlu0.b32.end [16/16] 0.0, 128
        %v221 = vpop.trf.xlu0
        %v222 = vpop.trf.xlu0
        %v223 = vpop.trf.xlu0
        %v224 = vpop.trf.xlu0
        %v225 = vpop.trf.xlu0
        %v226 = vpop.trf.xlu0
        %v227 = vpop.trf.xlu0
        %v228 = vpop.trf.xlu0
        %v229 = vpop.trf.xlu0
        %v230 = vpop.trf.xlu0
        %v231 = vpop.trf.xlu0
        %v232 = vpop.trf.xlu0
        %v233 = vpop.trf.xlu0
        %v234 = vpop.trf.xlu0
        %v235 = vpop.trf.xlu0
        %v236 = vpop.trf.xlu0
        %237 = vxpose.xlu0.b32.start [1/16] %v171, 128
        %238 = vxpose.xlu0.b32.cont [2/16] 0.0, 128
        %239 = vxpose.xlu0.b32.cont [3/16] 0.0, 128
        %240 = vxpose.xlu0.b32.cont [4/16] 0.0, 128
        %241 = vxpose.xlu0.b32.cont [5/16] 0.0, 128
        %242 = vxpose.xlu0.b32.cont [6/16] 0.0, 128
        %243 = vxpose.xlu0.b32.cont [7/16] 0.0, 128
        %244 = vxpose.xlu0.b32.cont [8/16] 0.0, 128
        %245 = vxpose.xlu0.b32.cont [9/16] 0.0, 128
        %246 = vxpose.xlu0.b32.cont [10/16] 0.0, 128
        %247 = vxpose.xlu0.b32.cont [11/16] 0.0, 128
        %248 = vxpose.xlu0.b32.cont [12/16] 0.0, 128
        %249 = vxpose.xlu0.b32.cont [13/16] 0.0, 128
        %250 = vxpose.xlu0.b32.cont [14/16] 0.0, 128
        %251 = vxpose.xlu0.b32.cont [15/16] 0.0, 128
        %252 = vxpose.xlu0.b32.end [16/16] 0.0, 128
        %v253 = vpop.trf.xlu0
        %v254 = vpop.trf.xlu0
        %v255 = vpop.trf.xlu0
        %v256 = vpop.trf.xlu0
        %v257 = vpop.trf.xlu0
        %v258 = vpop.trf.xlu0
        %v259 = vpop.trf.xlu0
        %v260 = vpop.trf.xlu0
        %v261 = vpop.trf.xlu0
        %v262 = vpop.trf.xlu0
        %v263 = vpop.trf.xlu0
        %v264 = vpop.trf.xlu0
        %v265 = vpop.trf.xlu0
        %v266 = vpop.trf.xlu0
        %v267 = vpop.trf.xlu0
        %v268 = vpop.trf.xlu0
        %269 = vxpose.xlu0.b32.start [1/16] %v172, 128
        %270 = vxpose.xlu0.b32.cont [2/16] 0.0, 128
        %271 = vxpose.xlu0.b32.cont [3/16] 0.0, 128
        %272 = vxpose.xlu0.b32.cont [4/16] 0.0, 128
        %273 = vxpose.xlu0.b32.cont [5/16] 0.0, 128
        %274 = vxpose.xlu0.b32.cont [6/16] 0.0, 128
        %275 = vxpose.xlu0.b32.cont [7/16] 0.0, 128
        %276 = vxpose.xlu0.b32.cont [8/16] 0.0, 128
        %277 = vxpose.xlu0.b32.cont [9/16] 0.0, 128
        %278 = vxpose.xlu0.b32.cont [10/16] 0.0, 128
        %279 = vxpose.xlu0.b32.cont [11/16] 0.0, 128
        %280 = vxpose.xlu0.b32.cont [12/16] 0.0, 128
        %281 = vxpose.xlu0.b32.cont [13/16] 0.0, 128
        %282 = vxpose.xlu0.b32.cont [14/16] 0.0, 128
        %283 = vxpose.xlu0.b32.cont [15/16] 0.0, 128
        %284 = vxpose.xlu0.b32.end [16/16] 0.0, 128
        %v285 = vpop.trf.xlu0
        %v286 = vpop.trf.xlu0
        %v287 = vpop.trf.xlu0
        %v288 = vpop.trf.xlu0
        %v289 = vpop.trf.xlu0
        %v290 = vpop.trf.xlu0
        %v291 = vpop.trf.xlu0
        %v292 = vpop.trf.xlu0
        %v293 = vpop.trf.xlu0
        %v294 = vpop.trf.xlu0
        %v295 = vpop.trf.xlu0
        %v296 = vpop.trf.xlu0
        %v297 = vpop.trf.xlu0
        %v298 = vpop.trf.xlu0
        %v299 = vpop.trf.xlu0
        %v300 = vpop.trf.xlu0
        %301 = vst [vmem:[#allocation2] ss:$2 sm:$0xff] %v189
        %s302 = scalar_lea.vmem [#allocation2], 16
        %303 = vst [vmem:[%s302] ss:$2 sm:$0xff] %v190
        %s304 = scalar_lea.vmem [#allocation2], 32
        %305 = vst [vmem:[%s304] ss:$2 sm:$0xff] %v221
        %s306 = scalar_lea.vmem [#allocation2], 48
        %307 = vst [vmem:[%s306] ss:$2 sm:$0xff] %v222
        %s308 = scalar_lea.vmem [#allocation2], 64
        %309 = vst [vmem:[%s308] ss:$2 sm:$0xff] %v253
        %s310 = scalar_lea.vmem [#allocation2], 80
        %311 = vst [vmem:[%s310] ss:$2 sm:$0xff] %v254
        %s312 = scalar_lea.vmem [#allocation2], 96
        %313 = vst [vmem:[%s312] ss:$2 sm:$0xff] %v285
        %s314 = scalar_lea.vmem [#allocation2], 112
        %315 = vst [vmem:[%s314] ss:$2 sm:$0xff] %v286
        %s316 = scalar_lea.vmem %s147, 8 [#allocation3]
        %v317 = vld [vmem:[%s316] sm:$0xff]
        %v318 = vld [vmem:[%s316 + $0x20] sm:$0xff]
        %v319 = vld [vmem:[%s316 + $0x40] sm:$0xff]
        %v320 = vld [vmem:[%s316 + $0x60] sm:$0xff]
        %321 = vxpose.xlu0.b32.start [1/16] %v317, 128
        %322 = vxpose.xlu0.b32.cont [2/16] 0.0, 128
        %323 = vxpose.xlu0.b32.cont [3/16] 0.0, 128
        %324 = vxpose.xlu0.b32.cont [4/16] 0.0, 128
        %325 = vxpose.xlu0.b32.cont [5/16] 0.0, 128
        %326 = vxpose.xlu0.b32.cont [6/16] 0.0, 128
        %327 = vxpose.xlu0.b32.cont [7/16] 0.0, 128
        %328 = vxpose.xlu0.b32.cont [8/16] 0.0, 128
        %329 = vxpose.xlu0.b32.cont [9/16] 0.0, 128
        %330 = vxpose.xlu0.b32.cont [10/16] 0.0, 128
        %331 = vxpose.xlu0.b32.cont [11/16] 0.0, 128
        %332 = vxpose.xlu0.b32.cont [12/16] 0.0, 128
        %333 = vxpose.xlu0.b32.cont [13/16] 0.0, 128
        %334 = vxpose.xlu0.b32.cont [14/16] 0.0, 128
        %335 = vxpose.xlu0.b32.cont [15/16] 0.0, 128
        %336 = vxpose.xlu0.b32.end [16/16] 0.0, 128
        %v337 = vpop.trf.xlu0
        %v338 = vpop.trf.xlu0
        %v339 = vpop.trf.xlu0
        %v340 = vpop.trf.xlu0
        %v341 = vpop.trf.xlu0
        %v342 = vpop.trf.xlu0
        %v343 = vpop.trf.xlu0
        %v344 = vpop.trf.xlu0
        %v345 = vpop.trf.xlu0
        %v346 = vpop.trf.xlu0
        %v347 = vpop.trf.xlu0
        %v348 = vpop.trf.xlu0
        %v349 = vpop.trf.xlu0
        %v350 = vpop.trf.xlu0
        %v351 = vpop.trf.xlu0
        %v352 = vpop.trf.xlu0
        %353 = vxpose.xlu0.b32.start [1/16] %v318, 128
        %354 = vxpose.xlu0.b32.cont [2/16] 0.0, 128
        %355 = vxpose.xlu0.b32.cont [3/16] 0.0, 128
        %356 = vxpose.xlu0.b32.cont [4/16] 0.0, 128
        %357 = vxpose.xlu0.b32.cont [5/16] 0.0, 128
        %358 = vxpose.xlu0.b32.cont [6/16] 0.0, 128
        %359 = vxpose.xlu0.b32.cont [7/16] 0.0, 128
        %360 = vxpose.xlu0.b32.cont [8/16] 0.0, 128
        %361 = vxpose.xlu0.b32.cont [9/16] 0.0, 128
        %362 = vxpose.xlu0.b32.cont [10/16] 0.0, 128
        %363 = vxpose.xlu0.b32.cont [11/16] 0.0, 128
        %364 = vxpose.xlu0.b32.cont [12/16] 0.0, 128
        %365 = vxpose.xlu0.b32.cont [13/16] 0.0, 128
        %366 = vxpose.xlu0.b32.cont [14/16] 0.0, 128
        %367 = vxpose.xlu0.b32.cont [15/16] 0.0, 128
        %368 = vxpose.xlu0.b32.end [16/16] 0.0, 128
        %v369 = vpop.trf.xlu0
        %v370 = vpop.trf.xlu0
        %v371 = vpop.trf.xlu0
        %v372 = vpop.trf.xlu0
        %v373 = vpop.trf.xlu0
        %v374 = vpop.trf.xlu0
        %v375 = vpop.trf.xlu0
        %v376 = vpop.trf.xlu0
        %v377 = vpop.trf.xlu0
        %v378 = vpop.trf.xlu0
        %v379 = vpop.trf.xlu0
        %v380 = vpop.trf.xlu0
        %v381 = vpop.trf.xlu0
        %v382 = vpop.trf.xlu0
        %v383 = vpop.trf.xlu0
        %v384 = vpop.trf.xlu0
        %385 = vxpose.xlu0.b32.start [1/16] %v319, 128
        %386 = vxpose.xlu0.b32.cont [2/16] 0.0, 128
        %387 = vxpose.xlu0.b32.cont [3/16] 0.0, 128
        %388 = vxpose.xlu0.b32.cont [4/16] 0.0, 128
        %389 = vxpose.xlu0.b32.cont [5/16] 0.0, 128
        %390 = vxpose.xlu0.b32.cont [6/16] 0.0, 128
        %391 = vxpose.xlu0.b32.cont [7/16] 0.0, 128
        %392 = vxpose.xlu0.b32.cont [8/16] 0.0, 128
        %393 = vxpose.xlu0.b32.cont [9/16] 0.0, 128
        %394 = vxpose.xlu0.b32.cont [10/16] 0.0, 128
        %395 = vxpose.xlu0.b32.cont [11/16] 0.0, 128
        %396 = vxpose.xlu0.b32.cont [12/16] 0.0, 128
        %397 = vxpose.xlu0.b32.cont [13/16] 0.0, 128
        %398 = vxpose.xlu0.b32.cont [14/16] 0.0, 128
        %399 = vxpose.xlu0.b32.cont [15/16] 0.0, 128
        %400 = vxpose.xlu0.b32.end [16/16] 0.0, 128
        %v401 = vpop.trf.xlu0
        %v402 = vpop.trf.xlu0
        %v403 = vpop.trf.xlu0
        %v404 = vpop.trf.xlu0
        %v405 = vpop.trf.xlu0
        %v406 = vpop.trf.xlu0
        %v407 = vpop.trf.xlu0
        %v408 = vpop.trf.xlu0
        %v409 = vpop.trf.xlu0
        %v410 = vpop.trf.xlu0
        %v411 = vpop.trf.xlu0
        %v412 = vpop.trf.xlu0
        %v413 = vpop.trf.xlu0
        %v414 = vpop.trf.xlu0
        %v415 = vpop.trf.xlu0
        %v416 = vpop.trf.xlu0
        %417 = vxpose.xlu0.b32.start [1/16] %v320, 128
        %418 = vxpose.xlu0.b32.cont [2/16] 0.0, 128
        %419 = vxpose.xlu0.b32.cont [3/16] 0.0, 128
        %420 = vxpose.xlu0.b32.cont [4/16] 0.0, 128
        %421 = vxpose.xlu0.b32.cont [5/16] 0.0, 128
        %422 = vxpose.xlu0.b32.cont [6/16] 0.0, 128
        %423 = vxpose.xlu0.b32.cont [7/16] 0.0, 128
        %424 = vxpose.xlu0.b32.cont [8/16] 0.0, 128
        %425 = vxpose.xlu0.b32.cont [9/16] 0.0, 128
        %426 = vxpose.xlu0.b32.cont [10/16] 0.0, 128
        %427 = vxpose.xlu0.b32.cont [11/16] 0.0, 128
        %428 = vxpose.xlu0.b32.cont [12/16] 0.0, 128
        %429 = vxpose.xlu0.b32.cont [13/16] 0.0, 128
        %430 = vxpose.xlu0.b32.cont [14/16] 0.0, 128
        %431 = vxpose.xlu0.b32.cont [15/16] 0.0, 128
        %432 = vxpose.xlu0.b32.end [16/16] 0.0, 128
        %v433 = vpop.trf.xlu0
        %v434 = vpop.trf.xlu0
        %v435 = vpop.trf.xlu0
        %v436 = vpop.trf.xlu0
        %v437 = vpop.trf.xlu0
        %v438 = vpop.trf.xlu0
        %v439 = vpop.trf.xlu0
        %v440 = vpop.trf.xlu0
        %v441 = vpop.trf.xlu0
        %v442 = vpop.trf.xlu0
        %v443 = vpop.trf.xlu0
        %v444 = vpop.trf.xlu0
        %v445 = vpop.trf.xlu0
        %v446 = vpop.trf.xlu0
        %v447 = vpop.trf.xlu0
        %v448 = vpop.trf.xlu0
        %s449 = scalar_lea.vmem [#allocation2], 1
        %450 = vst [vmem:[%s449] ss:$2 sm:$0xff] %v337
        %s451 = scalar_lea.vmem [#allocation2], 17
        %452 = vst [vmem:[%s451] ss:$2 sm:$0xff] %v338
        %s453 = scalar_lea.vmem [#allocation2], 33
        %454 = vst [vmem:[%s453] ss:$2 sm:$0xff] %v369
        %s455 = scalar_lea.vmem [#allocation2], 49
        %456 = vst [vmem:[%s455] ss:$2 sm:$0xff] %v370
        %s457 = scalar_lea.vmem [#allocation2], 65
        %458 = vst [vmem:[%s457] ss:$2 sm:$0xff] %v401
        %s459 = scalar_lea.vmem [#allocation2], 81
        %460 = vst [vmem:[%s459] ss:$2 sm:$0xff] %v402
        %s461 = scalar_lea.vmem [#allocation2], 97
        %462 = vst [vmem:[%s461] ss:$2 sm:$0xff] %v433
        %s463 = scalar_lea.vmem [#allocation2], 113
        %464 = vst [vmem:[%s463] ss:$2 sm:$0xff] %v434
        %v465 = vld [vmem:[#allocation2] sm:$0xff]
        %v466 = vld [vmem:[#allocation2 + $0x8] sm:$0xff]
        %v467 = vld [vmem:[#allocation2 + $0x10] sm:$0xff]
        %v468 = vld [vmem:[#allocation2 + $0x18] sm:$0xff]
        %v469 = vld [vmem:[#allocation2 + $0x20] sm:$0xff]
        %v470 = vld [vmem:[#allocation2 + $0x28] sm:$0xff]
        %v471 = vld [vmem:[#allocation2 + $0x30] sm:$0xff]
        %v472 = vld [vmem:[#allocation2 + $0x38] sm:$0xff]
        %v473 = vld [vmem:[#allocation2 + $0x40] sm:$0xff]
        %v474 = vld [vmem:[#allocation2 + $0x48] sm:$0xff]
        %v475 = vld [vmem:[#allocation2 + $0x50] sm:$0xff]
        %v476 = vld [vmem:[#allocation2 + $0x58] sm:$0xff]
        %v477 = vld [vmem:[#allocation2 + $0x60] sm:$0xff]
        %v478 = vld [vmem:[#allocation2 + $0x68] sm:$0xff]
        %v479 = vld [vmem:[#allocation2 + $0x70] sm:$0xff]
        %v480 = vld [vmem:[#allocation2 + $0x78] sm:$0xff]
        %481 = vxpose.xlu0.b32.start [1/16] %v465, 128
        %482 = vxpose.xlu0.b32.cont [2/16] %v466, 128
        %483 = vxpose.xlu0.b32.cont [3/16] %v467, 128
        %484 = vxpose.xlu0.b32.cont [4/16] %v468, 128
        %485 = vxpose.xlu0.b32.cont [5/16] 0.0, 128
        %486 = vxpose.xlu0.b32.cont [6/16] 0.0, 128
        %487 = vxpose.xlu0.b32.cont [7/16] 0.0, 128
        %488 = vxpose.xlu0.b32.cont [8/16] 0.0, 128
        %489 = vxpose.xlu0.b32.cont [9/16] 0.0, 128
        %490 = vxpose.xlu0.b32.cont [10/16] 0.0, 128
        %491 = vxpose.xlu0.b32.cont [11/16] 0.0, 128
        %492 = vxpose.xlu0.b32.cont [12/16] 0.0, 128
        %493 = vxpose.xlu0.b32.cont [13/16] 0.0, 128
        %494 = vxpose.xlu0.b32.cont [14/16] 0.0, 128
        %495 = vxpose.xlu0.b32.cont [15/16] 0.0, 128
        %496 = vxpose.xlu0.b32.end [16/16] 0.0, 128
        %v497 = vpop.trf.xlu0
        %v498 = vpop.trf.xlu0
        %v499 = vpop.trf.xlu0
        %v500 = vpop.trf.xlu0
        %v501 = vpop.trf.xlu0
        %v502 = vpop.trf.xlu0
        %v503 = vpop.trf.xlu0
        %v504 = vpop.trf.xlu0
        %v505 = vpop.trf.xlu0
        %v506 = vpop.trf.xlu0
        %v507 = vpop.trf.xlu0
        %v508 = vpop.trf.xlu0
        %v509 = vpop.trf.xlu0
        %v510 = vpop.trf.xlu0
        %v511 = vpop.trf.xlu0
        %v512 = vpop.trf.xlu0
        %513 = vxpose.xlu0.b32.start [1/16] %v469, 128
        %514 = vxpose.xlu0.b32.cont [2/16] %v470, 128
        %515 = vxpose.xlu0.b32.cont [3/16] %v471, 128
        %516 = vxpose.xlu0.b32.cont [4/16] %v472, 128
        %517 = vxpose.xlu0.b32.cont [5/16] 0.0, 128
        %518 = vxpose.xlu0.b32.cont [6/16] 0.0, 128
        %519 = vxpose.xlu0.b32.cont [7/16] 0.0, 128
        %520 = vxpose.xlu0.b32.cont [8/16] 0.0, 128
        %521 = vxpose.xlu0.b32.cont [9/16] 0.0, 128
        %522 = vxpose.xlu0.b32.cont [10/16] 0.0, 128
        %523 = vxpose.xlu0.b32.cont [11/16] 0.0, 128
        %524 = vxpose.xlu0.b32.cont [12/16] 0.0, 128
        %525 = vxpose.xlu0.b32.cont [13/16] 0.0, 128
        %526 = vxpose.xlu0.b32.cont [14/16] 0.0, 128
        %527 = vxpose.xlu0.b32.cont [15/16] 0.0, 128
        %528 = vxpose.xlu0.b32.end [16/16] 0.0, 128
        %v529 = vpop.trf.xlu0
        %v530 = vpop.trf.xlu0
        %v531 = vpop.trf.xlu0
        %v532 = vpop.trf.xlu0
        %v533 = vpop.trf.xlu0
        %v534 = vpop.trf.xlu0
        %v535 = vpop.trf.xlu0
        %v536 = vpop.trf.xlu0
        %v537 = vpop.trf.xlu0
        %v538 = vpop.trf.xlu0
        %v539 = vpop.trf.xlu0
        %v540 = vpop.trf.xlu0
        %v541 = vpop.trf.xlu0
        %v542 = vpop.trf.xlu0
        %v543 = vpop.trf.xlu0
        %v544 = vpop.trf.xlu0
        %545 = vxpose.xlu0.b32.start [1/16] %v473, 128
        %546 = vxpose.xlu0.b32.cont [2/16] %v474, 128
        %547 = vxpose.xlu0.b32.cont [3/16] %v475, 128
        %548 = vxpose.xlu0.b32.cont [4/16] %v476, 128
        %549 = vxpose.xlu0.b32.cont [5/16] 0.0, 128
        %550 = vxpose.xlu0.b32.cont [6/16] 0.0, 128
        %551 = vxpose.xlu0.b32.cont [7/16] 0.0, 128
        %552 = vxpose.xlu0.b32.cont [8/16] 0.0, 128
        %553 = vxpose.xlu0.b32.cont [9/16] 0.0, 128
        %554 = vxpose.xlu0.b32.cont [10/16] 0.0, 128
        %555 = vxpose.xlu0.b32.cont [11/16] 0.0, 128
        %556 = vxpose.xlu0.b32.cont [12/16] 0.0, 128
        %557 = vxpose.xlu0.b32.cont [13/16] 0.0, 128
        %558 = vxpose.xlu0.b32.cont [14/16] 0.0, 128
        %559 = vxpose.xlu0.b32.cont [15/16] 0.0, 128
        %560 = vxpose.xlu0.b32.end [16/16] 0.0, 128
        %v561 = vpop.trf.xlu0
        %v562 = vpop.trf.xlu0
        %v563 = vpop.trf.xlu0
        %v564 = vpop.trf.xlu0
        %v565 = vpop.trf.xlu0
        %v566 = vpop.trf.xlu0
        %v567 = vpop.trf.xlu0
        %v568 = vpop.trf.xlu0
        %v569 = vpop.trf.xlu0
        %v570 = vpop.trf.xlu0
        %v571 = vpop.trf.xlu0
        %v572 = vpop.trf.xlu0
        %v573 = vpop.trf.xlu0
        %v574 = vpop.trf.xlu0
        %v575 = vpop.trf.xlu0
        %v576 = vpop.trf.xlu0
        %577 = vxpose.xlu0.b32.start [1/16] %v477, 128
        %578 = vxpose.xlu0.b32.cont [2/16] %v478, 128
        %579 = vxpose.xlu0.b32.cont [3/16] %v479, 128
        %580 = vxpose.xlu0.b32.cont [4/16] %v480, 128
        %581 = vxpose.xlu0.b32.cont [5/16] 0.0, 128
        %582 = vxpose.xlu0.b32.cont [6/16] 0.0, 128
        %583 = vxpose.xlu0.b32.cont [7/16] 0.0, 128
        %584 = vxpose.xlu0.b32.cont [8/16] 0.0, 128
        %585 = vxpose.xlu0.b32.cont [9/16] 0.0, 128
        %586 = vxpose.xlu0.b32.cont [10/16] 0.0, 128
        %587 = vxpose.xlu0.b32.cont [11/16] 0.0, 128
        %588 = vxpose.xlu0.b32.cont [12/16] 0.0, 128
        %589 = vxpose.xlu0.b32.cont [13/16] 0.0, 128
        %590 = vxpose.xlu0.b32.cont [14/16] 0.0, 128
        %591 = vxpose.xlu0.b32.cont [15/16] 0.0, 128
        %592 = vxpose.xlu0.b32.end [16/16] 0.0, 128
        %v593 = vpop.trf.xlu0
        %v594 = vpop.trf.xlu0
        %v595 = vpop.trf.xlu0
        %v596 = vpop.trf.xlu0
        %v597 = vpop.trf.xlu0
        %v598 = vpop.trf.xlu0
        %v599 = vpop.trf.xlu0
        %v600 = vpop.trf.xlu0
        %v601 = vpop.trf.xlu0
        %v602 = vpop.trf.xlu0
        %v603 = vpop.trf.xlu0
        %v604 = vpop.trf.xlu0
        %v605 = vpop.trf.xlu0
        %v606 = vpop.trf.xlu0
        %v607 = vpop.trf.xlu0
        %v608 = vpop.trf.xlu0
        %vm609 = vcmask 261120
        %610 = vst.msk [vmem:[%s165] sm:$0xff] %vm609, %v497
        %611 = vst.msk [vmem:[%s165 + $0x8] sm:$0xff] %vm609, %v529
        %612 = vst.msk [vmem:[%s165 + $0x10] sm:$0xff] %vm609, %v561
        %613 = vst.msk [vmem:[%s165 + $0x18] sm:$0xff] %vm609, %v593
        %s614 = scalar_lea.vmem %s147, 16 [#allocation3]
        %v615 = vld [vmem:[%s614] sm:$0xff]
        %v616 = vld [vmem:[%s614 + $0x20] sm:$0xff]
        %v617 = vld [vmem:[%s614 + $0x40] sm:$0xff]
        %v618 = vld [vmem:[%s614 + $0x60] sm:$0xff]
        %619 = vxpose.xlu0.b32.start [1/16] %v615, 128
        %620 = vxpose.xlu0.b32.cont [2/16] 0.0, 128
        %621 = vxpose.xlu0.b32.cont [3/16] 0.0, 128
        %622 = vxpose.xlu0.b32.cont [4/16] 0.0, 128
        %623 = vxpose.xlu0.b32.cont [5/16] 0.0, 128
        %624 = vxpose.xlu0.b32.cont [6/16] 0.0, 128
        %625 = vxpose.xlu0.b32.cont [7/16] 0.0, 128
        %626 = vxpose.xlu0.b32.cont [8/16] 0.0, 128
        %627 = vxpose.xlu0.b32.cont [9/16] 0.0, 128
        %628 = vxpose.xlu0.b32.cont [10/16] 0.0, 128
        %629 = vxpose.xlu0.b32.cont [11/16] 0.0, 128
        %630 = vxpose.xlu0.b32.cont [12/16] 0.0, 128
        %631 = vxpose.xlu0.b32.cont [13/16] 0.0, 128
        %632 = vxpose.xlu0.b32.cont [14/16] 0.0, 128
        %633 = vxpose.xlu0.b32.cont [15/16] 0.0, 128
        %634 = vxpose.xlu0.b32.end [16/16] 0.0, 128
        %v635 = vpop.trf.xlu0
        %v636 = vpop.trf.xlu0
        %v637 = vpop.trf.xlu0
        %v638 = vpop.trf.xlu0
        %v639 = vpop.trf.xlu0
        %v640 = vpop.trf.xlu0
        %v641 = vpop.trf.xlu0
        %v642 = vpop.trf.xlu0
        %v643 = vpop.trf.xlu0
        %v644 = vpop.trf.xlu0
        %v645 = vpop.trf.xlu0
        %v646 = vpop.trf.xlu0
        %v647 = vpop.trf.xlu0
        %v648 = vpop.trf.xlu0
        %v649 = vpop.trf.xlu0
        %v650 = vpop.trf.xlu0
        %651 = vxpose.xlu0.b32.start [1/16] %v616, 128
        %652 = vxpose.xlu0.b32.cont [2/16] 0.0, 128
        %653 = vxpose.xlu0.b32.cont [3/16] 0.0, 128
        %654 = vxpose.xlu0.b32.cont [4/16] 0.0, 128
        %655 = vxpose.xlu0.b32.cont [5/16] 0.0, 128
        %656 = vxpose.xlu0.b32.cont [6/16] 0.0, 128
        %657 = vxpose.xlu0.b32.cont [7/16] 0.0, 128
        %658 = vxpose.xlu0.b32.cont [8/16] 0.0, 128
        %659 = vxpose.xlu0.b32.cont [9/16] 0.0, 128
        %660 = vxpose.xlu0.b32.cont [10/16] 0.0, 128
        %661 = vxpose.xlu0.b32.cont [11/16] 0.0, 128
        %662 = vxpose.xlu0.b32.cont [12/16] 0.0, 128
        %663 = vxpose.xlu0.b32.cont [13/16] 0.0, 128
        %664 = vxpose.xlu0.b32.cont [14/16] 0.0, 128
        %665 = vxpose.xlu0.b32.cont [15/16] 0.0, 128
        %666 = vxpose.xlu0.b32.end [16/16] 0.0, 128
        %v667 = vpop.trf.xlu0
        %v668 = vpop.trf.xlu0
        %v669 = vpop.trf.xlu0
        %v670 = vpop.trf.xlu0
        %v671 = vpop.trf.xlu0
        %v672 = vpop.trf.xlu0
        %v673 = vpop.trf.xlu0
        %v674 = vpop.trf.xlu0
        %v675 = vpop.trf.xlu0
        %v676 = vpop.trf.xlu0
        %v677 = vpop.trf.xlu0
        %v678 = vpop.trf.xlu0
        %v679 = vpop.trf.xlu0
        %v680 = vpop.trf.xlu0
        %v681 = vpop.trf.xlu0
        %v682 = vpop.trf.xlu0
        %683 = vxpose.xlu0.b32.start [1/16] %v617, 128
        %684 = vxpose.xlu0.b32.cont [2/16] 0.0, 128
        %685 = vxpose.xlu0.b32.cont [3/16] 0.0, 128
        %686 = vxpose.xlu0.b32.cont [4/16] 0.0, 128
        %687 = vxpose.xlu0.b32.cont [5/16] 0.0, 128
        %688 = vxpose.xlu0.b32.cont [6/16] 0.0, 128
        %689 = vxpose.xlu0.b32.cont [7/16] 0.0, 128
        %690 = vxpose.xlu0.b32.cont [8/16] 0.0, 128
        %691 = vxpose.xlu0.b32.cont [9/16] 0.0, 128
        %692 = vxpose.xlu0.b32.cont [10/16] 0.0, 128
        %693 = vxpose.xlu0.b32.cont [11/16] 0.0, 128
        %694 = vxpose.xlu0.b32.cont [12/16] 0.0, 128
        %695 = vxpose.xlu0.b32.cont [13/16] 0.0, 128
        %696 = vxpose.xlu0.b32.cont [14/16] 0.0, 128
        %697 = vxpose.xlu0.b32.cont [15/16] 0.0, 128
        %698 = vxpose.xlu0.b32.end [16/16] 0.0, 128
        %v699 = vpop.trf.xlu0
        %v700 = vpop.trf.xlu0
        %v701 = vpop.trf.xlu0
        %v702 = vpop.trf.xlu0
        %v703 = vpop.trf.xlu0
        %v704 = vpop.trf.xlu0
        %v705 = vpop.trf.xlu0
        %v706 = vpop.trf.xlu0
        %v707 = vpop.trf.xlu0
        %v708 = vpop.trf.xlu0
        %v709 = vpop.trf.xlu0
        %v710 = vpop.trf.xlu0
        %v711 = vpop.trf.xlu0
        %v712 = vpop.trf.xlu0
        %v713 = vpop.trf.xlu0
        %v714 = vpop.trf.xlu0
        %715 = vxpose.xlu0.b32.start [1/16] %v618, 128
        %716 = vxpose.xlu0.b32.cont [2/16] 0.0, 128
        %717 = vxpose.xlu0.b32.cont [3/16] 0.0, 128
        %718 = vxpose.xlu0.b32.cont [4/16] 0.0, 128
        %719 = vxpose.xlu0.b32.cont [5/16] 0.0, 128
        %720 = vxpose.xlu0.b32.cont [6/16] 0.0, 128
        %721 = vxpose.xlu0.b32.cont [7/16] 0.0, 128
        %722 = vxpose.xlu0.b32.cont [8/16] 0.0, 128
        %723 = vxpose.xlu0.b32.cont [9/16] 0.0, 128
        %724 = vxpose.xlu0.b32.cont [10/16] 0.0, 128
        %725 = vxpose.xlu0.b32.cont [11/16] 0.0, 128
        %726 = vxpose.xlu0.b32.cont [12/16] 0.0, 128
        %727 = vxpose.xlu0.b32.cont [13/16] 0.0, 128
        %728 = vxpose.xlu0.b32.cont [14/16] 0.0, 128
        %729 = vxpose.xlu0.b32.cont [15/16] 0.0, 128
        %730 = vxpose.xlu0.b32.end [16/16] 0.0, 128
        %v731 = vpop.trf.xlu0
        %v732 = vpop.trf.xlu0
        %v733 = vpop.trf.xlu0
        %v734 = vpop.trf.xlu0
        %v735 = vpop.trf.xlu0
        %v736 = vpop.trf.xlu0
        %v737 = vpop.trf.xlu0
        %v738 = vpop.trf.xlu0
        %v739 = vpop.trf.xlu0
        %v740 = vpop.trf.xlu0
        %v741 = vpop.trf.xlu0
        %v742 = vpop.trf.xlu0
        %v743 = vpop.trf.xlu0
        %v744 = vpop.trf.xlu0
        %v745 = vpop.trf.xlu0
        %v746 = vpop.trf.xlu0
        %747 = vst [vmem:[#allocation2] ss:$2 sm:$0xff] %v635
        %748 = vst [vmem:[%s302] ss:$2 sm:$0xff] %v636
        %749 = vst [vmem:[%s304] ss:$2 sm:$0xff] %v667
        %750 = vst [vmem:[%s306] ss:$2 sm:$0xff] %v668
        %751 = vst [vmem:[%s308] ss:$2 sm:$0xff] %v699
        %752 = vst [vmem:[%s310] ss:$2 sm:$0xff] %v700
        %753 = vst [vmem:[%s312] ss:$2 sm:$0xff] %v731
        %754 = vst [vmem:[%s314] ss:$2 sm:$0xff] %v732
        %s755 = scalar_lea.vmem %s147, 24 [#allocation3]
        %v756 = vld [vmem:[%s755] sm:$0xff]
        %v757 = vld [vmem:[%s755 + $0x20] sm:$0xff]
        %v758 = vld [vmem:[%s755 + $0x40] sm:$0xff]
        %v759 = vld [vmem:[%s755 + $0x60] sm:$0xff]
        %760 = vxpose.xlu0.b32.start [1/16] %v756, 128
        %761 = vxpose.xlu0.b32.cont [2/16] 0.0, 128
        %762 = vxpose.xlu0.b32.cont [3/16] 0.0, 128
        %763 = vxpose.xlu0.b32.cont [4/16] 0.0, 128
        %764 = vxpose.xlu0.b32.cont [5/16] 0.0, 128
        %765 = vxpose.xlu0.b32.cont [6/16] 0.0, 128
        %766 = vxpose.xlu0.b32.cont [7/16] 0.0, 128
        %767 = vxpose.xlu0.b32.cont [8/16] 0.0, 128
        %768 = vxpose.xlu0.b32.cont [9/16] 0.0, 128
        %769 = vxpose.xlu0.b32.cont [10/16] 0.0, 128
        %770 = vxpose.xlu0.b32.cont [11/16] 0.0, 128
        %771 = vxpose.xlu0.b32.cont [12/16] 0.0, 128
        %772 = vxpose.xlu0.b32.cont [13/16] 0.0, 128
        %773 = vxpose.xlu0.b32.cont [14/16] 0.0, 128
        %774 = vxpose.xlu0.b32.cont [15/16] 0.0, 128
        %775 = vxpose.xlu0.b32.end [16/16] 0.0, 128
        %v776 = vpop.trf.xlu0
        %v777 = vpop.trf.xlu0
        %v778 = vpop.trf.xlu0
        %v779 = vpop.trf.xlu0
        %v780 = vpop.trf.xlu0
        %v781 = vpop.trf.xlu0
        %v782 = vpop.trf.xlu0
        %v783 = vpop.trf.xlu0
        %v784 = vpop.trf.xlu0
        %v785 = vpop.trf.xlu0
        %v786 = vpop.trf.xlu0
        %v787 = vpop.trf.xlu0
        %v788 = vpop.trf.xlu0
        %v789 = vpop.trf.xlu0
        %v790 = vpop.trf.xlu0
        %v791 = vpop.trf.xlu0
        %792 = vxpose.xlu0.b32.start [1/16] %v757, 128
        %793 = vxpose.xlu0.b32.cont [2/16] 0.0, 128
        %794 = vxpose.xlu0.b32.cont [3/16] 0.0, 128
        %795 = vxpose.xlu0.b32.cont [4/16] 0.0, 128
        %796 = vxpose.xlu0.b32.cont [5/16] 0.0, 128
        %797 = vxpose.xlu0.b32.cont [6/16] 0.0, 128
        %798 = vxpose.xlu0.b32.cont [7/16] 0.0, 128
        %799 = vxpose.xlu0.b32.cont [8/16] 0.0, 128
        %800 = vxpose.xlu0.b32.cont [9/16] 0.0, 128
        %801 = vxpose.xlu0.b32.cont [10/16] 0.0, 128
        %802 = vxpose.xlu0.b32.cont [11/16] 0.0, 128
        %803 = vxpose.xlu0.b32.cont [12/16] 0.0, 128
        %804 = vxpose.xlu0.b32.cont [13/16] 0.0, 128
        %805 = vxpose.xlu0.b32.cont [14/16] 0.0, 128
        %806 = vxpose.xlu0.b32.cont [15/16] 0.0, 128
        %807 = vxpose.xlu0.b32.end [16/16] 0.0, 128
        %v808 = vpop.trf.xlu0
        %v809 = vpop.trf.xlu0
        %v810 = vpop.trf.xlu0
        %v811 = vpop.trf.xlu0
        %v812 = vpop.trf.xlu0
        %v813 = vpop.trf.xlu0
        %v814 = vpop.trf.xlu0
        %v815 = vpop.trf.xlu0
        %v816 = vpop.trf.xlu0
        %v817 = vpop.trf.xlu0
        %v818 = vpop.trf.xlu0
        %v819 = vpop.trf.xlu0
        %v820 = vpop.trf.xlu0
        %v821 = vpop.trf.xlu0
        %v822 = vpop.trf.xlu0
        %v823 = vpop.trf.xlu0
        %824 = vxpose.xlu0.b32.start [1/16] %v758, 128
        %825 = vxpose.xlu0.b32.cont [2/16] 0.0, 128
        %826 = vxpose.xlu0.b32.cont [3/16] 0.0, 128
        %827 = vxpose.xlu0.b32.cont [4/16] 0.0, 128
        %828 = vxpose.xlu0.b32.cont [5/16] 0.0, 128
        %829 = vxpose.xlu0.b32.cont [6/16] 0.0, 128
        %830 = vxpose.xlu0.b32.cont [7/16] 0.0, 128
        %831 = vxpose.xlu0.b32.cont [8/16] 0.0, 128
        %832 = vxpose.xlu0.b32.cont [9/16] 0.0, 128
        %833 = vxpose.xlu0.b32.cont [10/16] 0.0, 128
        %834 = vxpose.xlu0.b32.cont [11/16] 0.0, 128
        %835 = vxpose.xlu0.b32.cont [12/16] 0.0, 128
        %836 = vxpose.xlu0.b32.cont [13/16] 0.0, 128
        %837 = vxpose.xlu0.b32.cont [14/16] 0.0, 128
        %838 = vxpose.xlu0.b32.cont [15/16] 0.0, 128
        %839 = vxpose.xlu0.b32.end [16/16] 0.0, 128
        %v840 = vpop.trf.xlu0
        %v841 = vpop.trf.xlu0
        %v842 = vpop.trf.xlu0
        %v843 = vpop.trf.xlu0
        %v844 = vpop.trf.xlu0
        %v845 = vpop.trf.xlu0
        %v846 = vpop.trf.xlu0
        %v847 = vpop.trf.xlu0
        %v848 = vpop.trf.xlu0
        %v849 = vpop.trf.xlu0
        %v850 = vpop.trf.xlu0
        %v851 = vpop.trf.xlu0
        %v852 = vpop.trf.xlu0
        %v853 = vpop.trf.xlu0
        %v854 = vpop.trf.xlu0
        %v855 = vpop.trf.xlu0
        %856 = vxpose.xlu0.b32.start [1/16] %v759, 128
        %857 = vxpose.xlu0.b32.cont [2/16] 0.0, 128
        %858 = vxpose.xlu0.b32.cont [3/16] 0.0, 128
        %859 = vxpose.xlu0.b32.cont [4/16] 0.0, 128
        %860 = vxpose.xlu0.b32.cont [5/16] 0.0, 128
        %861 = vxpose.xlu0.b32.cont [6/16] 0.0, 128
        %862 = vxpose.xlu0.b32.cont [7/16] 0.0, 128
        %863 = vxpose.xlu0.b32.cont [8/16] 0.0, 128
        %864 = vxpose.xlu0.b32.cont [9/16] 0.0, 128
        %865 = vxpose.xlu0.b32.cont [10/16] 0.0, 128
        %866 = vxpose.xlu0.b32.cont [11/16] 0.0, 128
        %867 = vxpose.xlu0.b32.cont [12/16] 0.0, 128
        %868 = vxpose.xlu0.b32.cont [13/16] 0.0, 128
        %869 = vxpose.xlu0.b32.cont [14/16] 0.0, 128
        %870 = vxpose.xlu0.b32.cont [15/16] 0.0, 128
        %871 = vxpose.xlu0.b32.end [16/16] 0.0, 128
        %v872 = vpop.trf.xlu0
        %v873 = vpop.trf.xlu0
        %v874 = vpop.trf.xlu0
        %v875 = vpop.trf.xlu0
        %v876 = vpop.trf.xlu0
        %v877 = vpop.trf.xlu0
        %v878 = vpop.trf.xlu0
        %v879 = vpop.trf.xlu0
        %v880 = vpop.trf.xlu0
        %v881 = vpop.trf.xlu0
        %v882 = vpop.trf.xlu0
        %v883 = vpop.trf.xlu0
        %v884 = vpop.trf.xlu0
        %v885 = vpop.trf.xlu0
        %v886 = vpop.trf.xlu0
        %v887 = vpop.trf.xlu0
        %888 = vst [vmem:[%s449] ss:$2 sm:$0xff] %v776
        %889 = vst [vmem:[%s451] ss:$2 sm:$0xff] %v777
        %890 = vst [vmem:[%s453] ss:$2 sm:$0xff] %v808
        %891 = vst [vmem:[%s455] ss:$2 sm:$0xff] %v809
        %892 = vst [vmem:[%s457] ss:$2 sm:$0xff] %v840
        %893 = vst [vmem:[%s459] ss:$2 sm:$0xff] %v841
        %894 = vst [vmem:[%s461] ss:$2 sm:$0xff] %v872
        %895 = vst [vmem:[%s463] ss:$2 sm:$0xff] %v873
        %v896 = vld [vmem:[#allocation2] sm:$0xff]
        %v897 = vld [vmem:[#allocation2 + $0x8] sm:$0xff]
        %v898 = vld [vmem:[#allocation2 + $0x10] sm:$0xff]
        %v899 = vld [vmem:[#allocation2 + $0x18] sm:$0xff]
        %v900 = vld [vmem:[#allocation2 + $0x20] sm:$0xff]
        %v901 = vld [vmem:[#allocation2 + $0x28] sm:$0xff]
        %v902 = vld [vmem:[#allocation2 + $0x30] sm:$0xff]
        %v903 = vld [vmem:[#allocation2 + $0x38] sm:$0xff]
        %v904 = vld [vmem:[#allocation2 + $0x40] sm:$0xff]
        %v905 = vld [vmem:[#allocation2 + $0x48] sm:$0xff]
        %v906 = vld [vmem:[#allocation2 + $0x50] sm:$0xff]
        %v907 = vld [vmem:[#allocation2 + $0x58] sm:$0xff]
        %v908 = vld [vmem:[#allocation2 + $0x60] sm:$0xff]
        %v909 = vld [vmem:[#allocation2 + $0x68] sm:$0xff]
        %v910 = vld [vmem:[#allocation2 + $0x70] sm:$0xff]
        %v911 = vld [vmem:[#allocation2 + $0x78] sm:$0xff]
        %912 = vxpose.xlu0.b32.start [1/16] %v896, 128
        %913 = vxpose.xlu0.b32.cont [2/16] %v897, 128
        %914 = vxpose.xlu0.b32.cont [3/16] %v898, 128
        %915 = vxpose.xlu0.b32.cont [4/16] %v899, 128
        %916 = vxpose.xlu0.b32.cont [5/16] 0.0, 128
        %917 = vxpose.xlu0.b32.cont [6/16] 0.0, 128
        %918 = vxpose.xlu0.b32.cont [7/16] 0.0, 128
        %919 = vxpose.xlu0.b32.cont [8/16] 0.0, 128
        %920 = vxpose.xlu0.b32.cont [9/16] 0.0, 128
        %921 = vxpose.xlu0.b32.cont [10/16] 0.0, 128
        %922 = vxpose.xlu0.b32.cont [11/16] 0.0, 128
        %923 = vxpose.xlu0.b32.cont [12/16] 0.0, 128
        %924 = vxpose.xlu0.b32.cont [13/16] 0.0, 128
        %925 = vxpose.xlu0.b32.cont [14/16] 0.0, 128
        %926 = vxpose.xlu0.b32.cont [15/16] 0.0, 128
        %927 = vxpose.xlu0.b32.end [16/16] 0.0, 128
        %v928 = vpop.trf.xlu0
        %v929 = vpop.trf.xlu0
        %v930 = vpop.trf.xlu0
        %v931 = vpop.trf.xlu0
        %v932 = vpop.trf.xlu0
        %v933 = vpop.trf.xlu0
        %v934 = vpop.trf.xlu0
        %v935 = vpop.trf.xlu0
        %v936 = vpop.trf.xlu0
        %v937 = vpop.trf.xlu0
        %v938 = vpop.trf.xlu0
        %v939 = vpop.trf.xlu0
        %v940 = vpop.trf.xlu0
        %v941 = vpop.trf.xlu0
        %v942 = vpop.trf.xlu0
        %v943 = vpop.trf.xlu0
        %944 = vxpose.xlu0.b32.start [1/16] %v900, 128
        %945 = vxpose.xlu0.b32.cont [2/16] %v901, 128
        %946 = vxpose.xlu0.b32.cont [3/16] %v902, 128
        %947 = vxpose.xlu0.b32.cont [4/16] %v903, 128
        %948 = vxpose.xlu0.b32.cont [5/16] 0.0, 128
        %949 = vxpose.xlu0.b32.cont [6/16] 0.0, 128
        %950 = vxpose.xlu0.b32.cont [7/16] 0.0, 128
        %951 = vxpose.xlu0.b32.cont [8/16] 0.0, 128
        %952 = vxpose.xlu0.b32.cont [9/16] 0.0, 128
        %953 = vxpose.xlu0.b32.cont [10/16] 0.0, 128
        %954 = vxpose.xlu0.b32.cont [11/16] 0.0, 128
        %955 = vxpose.xlu0.b32.cont [12/16] 0.0, 128
        %956 = vxpose.xlu0.b32.cont [13/16] 0.0, 128
        %957 = vxpose.xlu0.b32.cont [14/16] 0.0, 128
        %958 = vxpose.xlu0.b32.cont [15/16] 0.0, 128
        %959 = vxpose.xlu0.b32.end [16/16] 0.0, 128
        %v960 = vpop.trf.xlu0
        %v961 = vpop.trf.xlu0
        %v962 = vpop.trf.xlu0
        %v963 = vpop.trf.xlu0
        %v964 = vpop.trf.xlu0
        %v965 = vpop.trf.xlu0
        %v966 = vpop.trf.xlu0
        %v967 = vpop.trf.xlu0
        %v968 = vpop.trf.xlu0
        %v969 = vpop.trf.xlu0
        %v970 = vpop.trf.xlu0
        %v971 = vpop.trf.xlu0
        %v972 = vpop.trf.xlu0
        %v973 = vpop.trf.xlu0
        %v974 = vpop.trf.xlu0
        %v975 = vpop.trf.xlu0
        %976 = vxpose.xlu0.b32.start [1/16] %v904, 128
        %977 = vxpose.xlu0.b32.cont [2/16] %v905, 128
        %978 = vxpose.xlu0.b32.cont [3/16] %v906, 128
        %979 = vxpose.xlu0.b32.cont [4/16] %v907, 128
        %980 = vxpose.xlu0.b32.cont [5/16] 0.0, 128
        %981 = vxpose.xlu0.b32.cont [6/16] 0.0, 128
        %982 = vxpose.xlu0.b32.cont [7/16] 0.0, 128
        %983 = vxpose.xlu0.b32.cont [8/16] 0.0, 128
        %984 = vxpose.xlu0.b32.cont [9/16] 0.0, 128
        %985 = vxpose.xlu0.b32.cont [10/16] 0.0, 128
        %986 = vxpose.xlu0.b32.cont [11/16] 0.0, 128
        %987 = vxpose.xlu0.b32.cont [12/16] 0.0, 128
        %988 = vxpose.xlu0.b32.cont [13/16] 0.0, 128
        %989 = vxpose.xlu0.b32.cont [14/16] 0.0, 128
        %990 = vxpose.xlu0.b32.cont [15/16] 0.0, 128
        %991 = vxpose.xlu0.b32.end [16/16] 0.0, 128
        %v992 = vpop.trf.xlu0
        %v993 = vpop.trf.xlu0
        %v994 = vpop.trf.xlu0
        %v995 = vpop.trf.xlu0
        %v996 = vpop.trf.xlu0
        %v997 = vpop.trf.xlu0
        %v998 = vpop.trf.xlu0
        %v999 = vpop.trf.xlu0
        %v1000 = vpop.trf.xlu0
        %v1001 = vpop.trf.xlu0
        %v1002 = vpop.trf.xlu0
        %v1003 = vpop.trf.xlu0
        %v1004 = vpop.trf.xlu0
        %v1005 = vpop.trf.xlu0
        %v1006 = vpop.trf.xlu0
        %v1007 = vpop.trf.xlu0
        %1008 = vxpose.xlu0.b32.start [1/16] %v908, 128
        %1009 = vxpose.xlu0.b32.cont [2/16] %v909, 128
        %1010 = vxpose.xlu0.b32.cont [3/16] %v910, 128
        %1011 = vxpose.xlu0.b32.cont [4/16] %v911, 128
        %1012 = vxpose.xlu0.b32.cont [5/16] 0.0, 128
        %1013 = vxpose.xlu0.b32.cont [6/16] 0.0, 128
        %1014 = vxpose.xlu0.b32.cont [7/16] 0.0, 128
        %1015 = vxpose.xlu0.b32.cont [8/16] 0.0, 128
        %1016 = vxpose.xlu0.b32.cont [9/16] 0.0, 128
        %1017 = vxpose.xlu0.b32.cont [10/16] 0.0, 128
        %1018 = vxpose.xlu0.b32.cont [11/16] 0.0, 128
        %1019 = vxpose.xlu0.b32.cont [12/16] 0.0, 128
        %1020 = vxpose.xlu0.b32.cont [13/16] 0.0, 128
        %1021 = vxpose.xlu0.b32.cont [14/16] 0.0, 128
        %1022 = vxpose.xlu0.b32.cont [15/16] 0.0, 128
        %1023 = vxpose.xlu0.b32.end [16/16] 0.0, 128
        %v1024 = vpop.trf.xlu0
        %v1025 = vpop.trf.xlu0
        %v1026 = vpop.trf.xlu0
        %v1027 = vpop.trf.xlu0
        %v1028 = vpop.trf.xlu0
        %v1029 = vpop.trf.xlu0
        %v1030 = vpop.trf.xlu0
        %v1031 = vpop.trf.xlu0
        %v1032 = vpop.trf.xlu0
        %v1033 = vpop.trf.xlu0
        %v1034 = vpop.trf.xlu0
        %v1035 = vpop.trf.xlu0
        %v1036 = vpop.trf.xlu0
        %v1037 = vpop.trf.xlu0
        %v1038 = vpop.trf.xlu0
        %v1039 = vpop.trf.xlu0
        %1044 = vrot.lane.b32.xlu0 %v928, 32
        %v1045 = vpop.permute.xlu0 %1044
        %1046 = vrot.lane.b32.xlu0 %v960, 32
        %v1047 = vpop.permute.xlu0 %1046
        %1048 = vrot.lane.b32.xlu0 %v992, 32
        %v1049 = vpop.permute.xlu0 %1048
        %1050 = vrot.lane.b32.xlu0 %v1024, 32
        %v1051 = vpop.permute.xlu0 %1050
        %vm1056 = vcmask 523520
        %1057 = vst.msk [vmem:[%s165] sm:$0xff] %vm1056, %v1045
        %1058 = vst.msk [vmem:[%s165 + $0x8] sm:$0xff] %vm1056, %v1047
        %1059 = vst.msk [vmem:[%s165 + $0x10] sm:$0xff] %vm1056, %v1049
        %1060 = vst.msk [vmem:[%s165 + $0x18] sm:$0xff] %vm1056, %v1051
        %s1061 = sand.u32 %s79, 1
        %s1062 = scalar_lea.sflag [#allocation5], %s1061
        %s1063 = sand.u32 %s79, 1
        %s1064 = smul.addr %s1063, 32
        %s1065 = scalar_lea.vmem [#allocation6], %s1064
        // Predicated region
        $region29: #{tpu_custom_call.1} parent=23 // pred_check
          %p1066 = pneg %p89
        $region30: #{tpu_custom_call.1} parent=23 // pred_check_branch
          %1068 = sbr.rel (%p1066) target = $region32
        $region31: #{tpu_custom_call.1} parent=23 // pred_region
          %s1069 = sadd.s32 %s23, %s24
          %s1070 = smul.u32 2, %s1069
          %s1072 = ssub.s32 512, 512
          %1073 = vsyncadd %s1062, %s1072
          %s1074 = smul.addr %s1070, 4
          %s1075 = sadd.s32 %s25, %s1074
          %s1076 = smul.addr %s1075, 128
          %s1077 = scalar_lea.hbm %s1, %s1076
          %s1078 = sshll.u32 %s1065, 4
          %s1079 = int_to_ptr.vmem [resolvable:$true] %s1078
          %1084 = dma.vmem_to_hbm [thread:$0]  %s1079, 512, %s1077, %s1062, 128, 256, 8
        $region32: #{tpu_custom_call.1} parent=23 // pred_fallthru
          _
      $region24: #{tpu_custom_call.1} parent=5 // pred_fallthru
        _
      %p1085 = scmp.le.s32.totalorder 2, %s13
      // Predicated region
      $region33: #{tpu_custom_call.1} parent=5 // pred_check
        %p1086 = pneg %p1085
      $region34: #{tpu_custom_call.1} parent=5 // pred_check_branch
        %1088 = sbr.rel (%p1086) target = $region36
      $region35: #{tpu_custom_call.1} parent=5 // pred_region
        %s1089 = ssub.s32 %s13, 2
        // Predicated region
        $region37: #{tpu_custom_call.1} parent=35 // pred_check
          %p1090 = pneg %p95
        $region38: #{tpu_custom_call.1} parent=35 // pred_check_branch
          %1092 = sbr.rel (%p1090) target = $region40
        $region39: #{tpu_custom_call.1} parent=35 // pred_region
          %s1093 = sand.u32 %s80, 1
          %s1094 = scalar_lea.sflag [#allocation5], %s1093
          %s1095 = sand.u32 %s80, 1
          %s1096 = smul.addr %s1095, 32
          %s1097 = scalar_lea.vmem [#allocation6], %s1096
          %1098 = dma.done %s1094, 512
        $region40: #{tpu_custom_call.1} parent=35 // pred_fallthru
          _
      $region36: #{tpu_custom_call.1} parent=5 // pred_fallthru
        _
    $region6: #{tpu_custom_call.1} parent=1 // loop_footer
      %s17 = sadd.s32 1, %s13
    $region7: #{tpu_custom_call.1} parent=1 // loop_footer_branch
      %12 = sbr.rel target = $region3
    $region8: #{tpu_custom_call.1} parent=1 // loop_exit
      _
    %1099 = vsyncpa [#allocation4], 1
    %s1100 = scalar_lea.sflag [#allocation4], 1
    %1101 = vsyncpa %s1100, 1
    %1102 = vsyncpa [#allocation5], 1
    %s1103 = scalar_lea.sflag [#allocation5], 1
    %1104 = vsyncpa %s1103, 1

</llo_original>
